<compile_context>
chip_gen: v5e
topology: v5e:2x2
jax: 0.10.0
libtpu: 0.0.40
codegen_flags: <defaults>
</compile_context>

<pallas_src>
import functools

import jax
import jax.numpy as jnp
from jax.experimental import pallas as pl
from jax.experimental.pallas import tpu as pltpu


SUBLANE = 8      # f32 sublane group
LANES = 128      # lane width


def _round_up(x, m):
    return ((x + m - 1) // m) * m


def _numeric_fused_kernel(x_ref, h0_ref, wih_ref, whh_ref, b_ref,
                          wout_ref, bout_ref,
                          out_ref, hT_ref,
                          y_scratch):
    """Fused RNN forward + linear head.

    x_ref    : (T*Bp, D)   time-major, batch padded to Bp (sublane aligned)
    h0_ref   : (Bp, H)
    wih_ref  : (D, H)      = W_ih^T
    whh_ref  : (H, H)      = W_hh^T
    b_ref    : (1, H)      = b_ih + b_hh
    wout_ref : (H, Op)     = W_lin^T lane-padded to Op (=128)
    bout_ref : (1, Op)
    out_ref  : (T*Bp, Op)  lane-dense output slab
    hT_ref   : (Bp, H)     final hidden state (aliased onto h0's buffer)
    y_scratch: (T*Bp, H)   VMEM slab of all hidden states
    """
    TBp, _ = x_ref.shape
    Bp, H = h0_ref.shape
    T = TBp // Bp

    # --- Input projection for every timestep at once (one MXU matmul). ---
    # Row block t*Bp:(t+1)*Bp corresponds to timestep t.
    xw = (jnp.dot(x_ref[...], wih_ref[...],
                  preferred_element_type=jnp.float32)
          + b_ref[...])                                    # (T*Bp, H)

    whh = whh_ref[...]                                     # (H, H), loaded once
    h = h0_ref[...]                                        # (Bp, H)

    # --- Recurrence: only tanh(xw_t + h @ W_hh^T) on the serial chain. ---
    for t in range(T):                                     # static unroll, T small
        xw_t = xw[t * Bp:(t + 1) * Bp, :]                  # (Bp, H) aligned slice
        h = jnp.tanh(xw_t + jnp.dot(h, whh,
                                    preferred_element_type=jnp.float32))
        y_scratch[t * Bp:(t + 1) * Bp, :] = h              # aligned (8, H) store

    # --- Deferred linear head: one matmul + bias, one lane-dense slab. ---
    out_ref[...] = (jnp.dot(y_scratch[...], wout_ref[...],
                            preferred_element_type=jnp.float32)
                    + bout_ref[...])                       # (T*Bp, Op)
    hT_ref[...] = h                                        # final hidden state


def make_numeric_forward(w_ih, w_hh, b_ih, b_hh, w_lin, b_lin):
    """One-time parameter packing; returns a jitted forward(x, h0).

    w_ih: (H, D)  w_hh: (H, H)  b_ih/b_hh: (H,)   (torch nn.RNN layout)
    w_lin: (O, H) b_lin: (O,)                     (torch nn.Linear layout)
    forward(x (T,B,D), h0 (1,B,H)) -> (output (T*B,O), state (1,B,H))
    """
    H, D = w_ih.shape
    O = w_lin.shape[0]
    Op = _round_up(max(O, 1), LANES)            # lane-dense head output width

    # ---- init-time prep (NOT in the per-call hot path) ----
    wih_t = jnp.asarray(w_ih, jnp.float32).T                      # (D, H)
    whh_t = jnp.asarray(w_hh, jnp.float32).T                      # (H, H)
    b = (jnp.asarray(b_ih, jnp.float32)
         + jnp.asarray(b_hh, jnp.float32)).reshape(1, H)          # folded biases
    wout_t = jnp.zeros((H, Op), jnp.float32).at[:, :O].set(
        jnp.asarray(w_lin, jnp.float32).T)                        # (H, Op)
    bout = jnp.zeros((1, Op), jnp.float32).at[:, :O].set(
        jnp.asarray(b_lin, jnp.float32))                          # (1, Op)

    vmem = pltpu.MemorySpace.VMEM

    @jax.jit
    def forward(x, h0):
        x = jnp.asarray(x, jnp.float32)                           # X.to(float32)
        T, B, _D = x.shape
        Bp = _round_up(B, SUBLANE)                                # sublane-aligned batch

        # Pad batch to a full sublane group (zero rows); padded rows stay
        # independent of real rows and are sliced off below.
        x_p = jnp.zeros((T, Bp, D), jnp.float32).at[:, :B, :].set(x)
        x2d = x_p.reshape(T * Bp, D)
        h0_p = jnp.zeros((Bp, H), jnp.float32).at[:B, :].set(
            jnp.asarray(h0, jnp.float32).reshape(B, H))

        out_pad, hT_pad = pl.pallas_call(
            _numeric_fused_kernel,
            out_shape=(
                jax.ShapeDtypeStruct((T * Bp, Op), jnp.float32),
                jax.ShapeDtypeStruct((Bp, H), jnp.float32),
            ),
            # No grid: whole arrays are single VMEM-resident blocks.
            in_specs=[pl.BlockSpec(memory_space=vmem)] * 7,
            out_specs=(pl.BlockSpec(memory_space=vmem),
                       pl.BlockSpec(memory_space=vmem)),
            scratch_shapes=[pltpu.VMEM((T * Bp, H), jnp.float32)],
            # Alias the final hidden state onto the h0 input buffer.
            input_output_aliases={1: 1},
        )(x2d, h0_p, wih_t, whh_t, b, wout_t, bout)

        output = out_pad.reshape(T, Bp, Op)[:, :B, :O].reshape(T * B, O)
        state = hT_pad[:B, :].reshape(1, B, H)
        return output, state

    return forward


def _reference_forward(x, h0, w_ih, w_hh, b_ih, b_hh, w_lin, b_lin):
    """Pure-JAX reference (mirrors torch nn.RNN + nn.Linear)."""
    x = jnp.asarray(x, jnp.float32)

    def step(h, x_t):
        h_new = jnp.tanh(x_t @ w_ih.T + b_ih + h @ w_hh.T + b_hh)
        return h_new, h_new

    hT, Y = jax.lax.scan(step, h0.reshape(h0.shape[1], h0.shape[2]), x)
    out = Y.reshape(-1, Y.shape[-1]) @ w_lin.T + b_lin
    return out, hT.reshape(1, *hT.shape)


if __name__ == "__main__":
    # Small shapes consistent with the module: seq=8, batch=2, input=16,
    # hidden=32, output=4, single-layer unidirectional tanh RNN.
    T, B, D, H, O = 8, 2, 16, 32, 4

    key = jax.random.PRNGKey(0)
    ks = jax.random.split(key, 7)
    x = jax.random.normal(ks[0], (T, B, D), dtype=jnp.float32)
    w_ih = 0.1 * jax.random.normal(ks[1], (H, D), dtype=jnp.float32)
    w_hh = 0.1 * jax.random.normal(ks[2], (H, H), dtype=jnp.float32)
    b_ih = 0.1 * jax.random.normal(ks[3], (H,), dtype=jnp.float32)
    b_hh = 0.1 * jax.random.normal(ks[4], (H,), dtype=jnp.float32)
    w_lin = 0.1 * jax.random.normal(ks[5], (O, H), dtype=jnp.float32)
    b_lin = 0.1 * jax.random.normal(ks[6], (O,), dtype=jnp.float32)

    # begin_state: zeros of shape (num_directions * num_layers, B, H) = (1, B, H)
    h0 = jnp.zeros((1, B, H), dtype=jnp.float32)

    # One-time parameter packing (init-time), then a cheap per-call forward.
    numeric_forward = make_numeric_forward(w_ih, w_hh, b_ih, b_hh, w_lin, b_lin)

    output, state = numeric_forward(x, h0)
    output = jax.block_until_ready(output)
    state = jax.block_until_ready(state)

    ref_out, ref_state = _reference_forward(x, h0, w_ih, w_hh, b_ih, b_hh,
                                            w_lin, b_lin)
    assert output.shape == (T * B, O)
    assert state.shape == (1, B, H)
    assert jnp.allclose(output, ref_out, atol=1e-5, rtol=1e-5)
    assert jnp.allclose(state, ref_state, atol=1e-5, rtol=1e-5)

    print("KERNEL_OK")
</pallas_src>

<mosaic_0001>
module attributes {stable_mosaic.version = 11 : i64} {
  func.func @_numeric_fused_kernel(%arg0: memref<64x16xf32, #tpu.memory_space<vmem>>, %arg1: memref<8x32xf32, #tpu.memory_space<vmem>>, %arg2: memref<16x32xf32, #tpu.memory_space<vmem>>, %arg3: memref<32x32xf32, #tpu.memory_space<vmem>>, %arg4: memref<1x32xf32, #tpu.memory_space<vmem>>, %arg5: memref<32x128xf32, #tpu.memory_space<vmem>>, %arg6: memref<1x128xf32, #tpu.memory_space<vmem>>, %arg7: memref<64x128xf32, #tpu.memory_space<vmem>>, %arg8: memref<8x32xf32, #tpu.memory_space<vmem>>, %arg9: memref<64x32xf32, #tpu.memory_space<vmem>>) attributes {dimension_semantics = [], scalar_prefetch = 0 : i64, scratch_operands = 1 : i64, tpu.core_type = #tpu.core_type<tc>} {
    %c0 = arith.constant 0 : index
    %c0_0 = arith.constant 0 : index
    %0 = vector.load %arg0[%c0, %c0_0] : memref<64x16xf32, #tpu.memory_space<vmem>>, vector<64x16xf32>
    %c0_1 = arith.constant 0 : index
    %c0_2 = arith.constant 0 : index
    %1 = vector.load %arg2[%c0_1, %c0_2] : memref<16x32xf32, #tpu.memory_space<vmem>>, vector<16x32xf32>
    %cst = arith.constant dense<0.000000e+00> : vector<64x32xf32>
    %2 = tpu.matmul %0, %1, %cst {dimension_numbers = #tpu.dot_dimension_numbers<[1], [0], [0], [1], [0, 0, 1, 1], [], []>} : vector<64x16xf32>, vector<16x32xf32>, vector<64x32xf32> -> vector<64x32xf32>
    %c0_3 = arith.constant 0 : index
    %c0_4 = arith.constant 0 : index
    %3 = vector.load %arg4[%c0_3, %c0_4] : memref<1x32xf32, #tpu.memory_space<vmem>>, vector<1x32xf32>
    %4 = vector.broadcast %3 : vector<1x32xf32> to vector<64x32xf32>
    %5 = arith.addf %2, %4 : vector<64x32xf32>
    %c0_5 = arith.constant 0 : index
    %c0_6 = arith.constant 0 : index
    %6 = vector.load %arg3[%c0_5, %c0_6] : memref<32x32xf32, #tpu.memory_space<vmem>>, vector<32x32xf32>
    %c0_7 = arith.constant 0 : index
    %c0_8 = arith.constant 0 : index
    %7 = vector.load %arg1[%c0_7, %c0_8] : memref<8x32xf32, #tpu.memory_space<vmem>>, vector<8x32xf32>
    %8 = vector.extract_strided_slice %5 {offsets = [0, 0], sizes = [8, 32], strides = [1, 1]} : vector<64x32xf32> to vector<8x32xf32>
    %cst_9 = arith.constant dense<0.000000e+00> : vector<8x32xf32>
    %9 = tpu.matmul %7, %6, %cst_9 {dimension_numbers = #tpu.dot_dimension_numbers<[1], [0], [0], [1], [0, 0, 1, 1], [], []>} : vector<8x32xf32>, vector<32x32xf32>, vector<8x32xf32> -> vector<8x32xf32>
    %10 = arith.addf %8, %9 : vector<8x32xf32>
    %11 = math.tanh %10 : vector<8x32xf32>
    %c0_10 = arith.constant 0 : index
    %c0_11 = arith.constant 0 : index
    %12 = vector.load %arg9[%c0_10, %c0_11] : memref<64x32xf32, #tpu.memory_space<vmem>>, vector<8x32xf32>
    tpu.vector_store %arg9[%c0_10, %c0_11], %11 {strides = array<i32>} : memref<64x32xf32, #tpu.memory_space<vmem>>, vector<8x32xf32>,
    %13 = vector.extract_strided_slice %5 {offsets = [8, 0], sizes = [8, 32], strides = [1, 1]} : vector<64x32xf32> to vector<8x32xf32>
    %cst_12 = arith.constant dense<0.000000e+00> : vector<8x32xf32>
    %14 = tpu.matmul %11, %6, %cst_12 {dimension_numbers = #tpu.dot_dimension_numbers<[1], [0], [0], [1], [0, 0, 1, 1], [], []>} : vector<8x32xf32>, vector<32x32xf32>, vector<8x32xf32> -> vector<8x32xf32>
    %15 = arith.addf %13, %14 : vector<8x32xf32>
    %16 = math.tanh %15 : vector<8x32xf32>
    %c8 = arith.constant 8 : index
    %c0_13 = arith.constant 0 : index
    %17 = vector.load %arg9[%c8, %c0_13] : memref<64x32xf32, #tpu.memory_space<vmem>>, vector<8x32xf32>
    tpu.vector_store %arg9[%c8, %c0_13], %16 {strides = array<i32>} : memref<64x32xf32, #tpu.memory_space<vmem>>, vector<8x32xf32>,
    %18 = vector.extract_strided_slice %5 {offsets = [16, 0], sizes = [8, 32], strides = [1, 1]} : vector<64x32xf32> to vector<8x32xf32>
    %cst_14 = arith.constant dense<0.000000e+00> : vector<8x32xf32>
    %19 = tpu.matmul %16, %6, %cst_14 {dimension_numbers = #tpu.dot_dimension_numbers<[1], [0], [0], [1], [0, 0, 1, 1], [], []>} : vector<8x32xf32>, vector<32x32xf32>, vector<8x32xf32> -> vector<8x32xf32>
    %20 = arith.addf %18, %19 : vector<8x32xf32>
    %21 = math.tanh %20 : vector<8x32xf32>
    %c16 = arith.constant 16 : index
    %c0_15 = arith.constant 0 : index
    %22 = vector.load %arg9[%c16, %c0_15] : memref<64x32xf32, #tpu.memory_space<vmem>>, vector<8x32xf32>
    tpu.vector_store %arg9[%c16, %c0_15], %21 {strides = array<i32>} : memref<64x32xf32, #tpu.memory_space<vmem>>, vector<8x32xf32>,
    %23 = vector.extract_strided_slice %5 {offsets = [24, 0], sizes = [8, 32], strides = [1, 1]} : vector<64x32xf32> to vector<8x32xf32>
    %cst_16 = arith.constant dense<0.000000e+00> : vector<8x32xf32>
    %24 = tpu.matmul %21, %6, %cst_16 {dimension_numbers = #tpu.dot_dimension_numbers<[1], [0], [0], [1], [0, 0, 1, 1], [], []>} : vector<8x32xf32>, vector<32x32xf32>, vector<8x32xf32> -> vector<8x32xf32>
    %25 = arith.addf %23, %24 : vector<8x32xf32>
    %26 = math.tanh %25 : vector<8x32xf32>
    %c24 = arith.constant 24 : index
    %c0_17 = arith.constant 0 : index
    %27 = vector.load %arg9[%c24, %c0_17] : memref<64x32xf32, #tpu.memory_space<vmem>>, vector<8x32xf32>
    tpu.vector_store %arg9[%c24, %c0_17], %26 {strides = array<i32>} : memref<64x32xf32, #tpu.memory_space<vmem>>, vector<8x32xf32>,
    %28 = vector.extract_strided_slice %5 {offsets = [32, 0], sizes = [8, 32], strides = [1, 1]} : vector<64x32xf32> to vector<8x32xf32>
    %cst_18 = arith.constant dense<0.000000e+00> : vector<8x32xf32>
    %29 = tpu.matmul %26, %6, %cst_18 {dimension_numbers = #tpu.dot_dimension_numbers<[1], [0], [0], [1], [0, 0, 1, 1], [], []>} : vector<8x32xf32>, vector<32x32xf32>, vector<8x32xf32> -> vector<8x32xf32>
    %30 = arith.addf %28, %29 : vector<8x32xf32>
    %31 = math.tanh %30 : vector<8x32xf32>
    %c32 = arith.constant 32 : index
    %c0_19 = arith.constant 0 : index
    %32 = vector.load %arg9[%c32, %c0_19] : memref<64x32xf32, #tpu.memory_space<vmem>>, vector<8x32xf32>
    tpu.vector_store %arg9[%c32, %c0_19], %31 {strides = array<i32>} : memref<64x32xf32, #tpu.memory_space<vmem>>, vector<8x32xf32>,
    %33 = vector.extract_strided_slice %5 {offsets = [40, 0], sizes = [8, 32], strides = [1, 1]} : vector<64x32xf32> to vector<8x32xf32>
    %cst_20 = arith.constant dense<0.000000e+00> : vector<8x32xf32>
    %34 = tpu.matmul %31, %6, %cst_20 {dimension_numbers = #tpu.dot_dimension_numbers<[1], [0], [0], [1], [0, 0, 1, 1], [], []>} : vector<8x32xf32>, vector<32x32xf32>, vector<8x32xf32> -> vector<8x32xf32>
    %35 = arith.addf %33, %34 : vector<8x32xf32>
    %36 = math.tanh %35 : vector<8x32xf32>
    %c40 = arith.constant 40 : index
    %c0_21 = arith.constant 0 : index
    %37 = vector.load %arg9[%c40, %c0_21] : memref<64x32xf32, #tpu.memory_space<vmem>>, vector<8x32xf32>
    tpu.vector_store %arg9[%c40, %c0_21], %36 {strides = array<i32>} : memref<64x32xf32, #tpu.memory_space<vmem>>, vector<8x32xf32>,
    %38 = vector.extract_strided_slice %5 {offsets = [48, 0], sizes = [8, 32], strides = [1, 1]} : vector<64x32xf32> to vector<8x32xf32>
    %cst_22 = arith.constant dense<0.000000e+00> : vector<8x32xf32>
    %39 = tpu.matmul %36, %6, %cst_22 {dimension_numbers = #tpu.dot_dimension_numbers<[1], [0], [0], [1], [0, 0, 1, 1], [], []>} : vector<8x32xf32>, vector<32x32xf32>, vector<8x32xf32> -> vector<8x32xf32>
    %40 = arith.addf %38, %39 : vector<8x32xf32>
    %41 = math.tanh %40 : vector<8x32xf32>
    %c48 = arith.constant 48 : index
    %c0_23 = arith.constant 0 : index
    %42 = vector.load %arg9[%c48, %c0_23] : memref<64x32xf32, #tpu.memory_space<vmem>>, vector<8x32xf32>
    tpu.vector_store %arg9[%c48, %c0_23], %41 {strides = array<i32>} : memref<64x32xf32, #tpu.memory_space<vmem>>, vector<8x32xf32>,
    %43 = vector.extract_strided_slice %5 {offsets = [56, 0], sizes = [8, 32], strides = [1, 1]} : vector<64x32xf32> to vector<8x32xf32>
    %cst_24 = arith.constant dense<0.000000e+00> : vector<8x32xf32>
    %44 = tpu.matmul %41, %6, %cst_24 {dimension_numbers = #tpu.dot_dimension_numbers<[1], [0], [0], [1], [0, 0, 1, 1], [], []>} : vector<8x32xf32>, vector<32x32xf32>, vector<8x32xf32> -> vector<8x32xf32>
    %45 = arith.addf %43, %44 : vector<8x32xf32>
    %46 = math.tanh %45 : vector<8x32xf32>
    %c56 = arith.constant 56 : index
    %c0_25 = arith.constant 0 : index
    %47 = vector.load %arg9[%c56, %c0_25] : memref<64x32xf32, #tpu.memory_space<vmem>>, vector<8x32xf32>
    tpu.vector_store %arg9[%c56, %c0_25], %46 {strides = array<i32>} : memref<64x32xf32, #tpu.memory_space<vmem>>, vector<8x32xf32>,
    %c0_26 = arith.constant 0 : index
    %c0_27 = arith.constant 0 : index
    %48 = vector.load %arg9[%c0_26, %c0_27] : memref<64x32xf32, #tpu.memory_space<vmem>>, vector<64x32xf32>
    %c0_28 = arith.constant 0 : index
    %c0_29 = arith.constant 0 : index
    %49 = vector.load %arg5[%c0_28, %c0_29] : memref<32x128xf32, #tpu.memory_space<vmem>>, vector<32x128xf32>
    %cst_30 = arith.constant dense<0.000000e+00> : vector<64x128xf32>
    %50 = tpu.matmul %48, %49, %cst_30 {dimension_numbers = #tpu.dot_dimension_numbers<[1], [0], [0], [1], [0, 0, 1, 1], [], []>} : vector<64x32xf32>, vector<32x128xf32>, vector<64x128xf32> -> vector<64x128xf32>
    %c0_31 = arith.constant 0 : index
    %c0_32 = arith.constant 0 : index
    %51 = vector.load %arg6[%c0_31, %c0_32] : memref<1x128xf32, #tpu.memory_space<vmem>>, vector<1x128xf32>
    %52 = vector.broadcast %51 : vector<1x128xf32> to vector<64x128xf32>
    %53 = arith.addf %50, %52 : vector<64x128xf32>
    %c0_33 = arith.constant 0 : index
    %c0_34 = arith.constant 0 : index
    %54 = vector.load %arg7[%c0_33, %c0_34] : memref<64x128xf32, #tpu.memory_space<vmem>>, vector<64x128xf32>
    tpu.vector_store %arg7[%c0_33, %c0_34], %53 {strides = array<i32>} : memref<64x128xf32, #tpu.memory_space<vmem>>, vector<64x128xf32>,
    %c0_35 = arith.constant 0 : index
    %c0_36 = arith.constant 0 : index
    %55 = vector.load %arg8[%c0_35, %c0_36] : memref<8x32xf32, #tpu.memory_space<vmem>>, vector<8x32xf32>
    tpu.vector_store %arg8[%c0_35, %c0_36], %46 {strides = array<i32>} : memref<8x32xf32, #tpu.memory_space<vmem>>, vector<8x32xf32>,
    return
  }
}

</mosaic_0001>

<llo_original>
// kernel: forward.1
$region0: #{forward.1}
  #allocation0 [shape = 'u32[]', space=smem, size = 0x4, offset = 0x4, fixed_abs, tag = 'smem constant byte address 0x4 - core index']
  #allocation1 [shape = 'u32[72,128]{1,0:T(1,128)}', space=vmem, size = 0x9000, scoped, tag = 'internal scratch']
  #allocation2 [shape = 'f32[64,32]{1,0:T(8,128)}', space=vmem, size = 0x8000, scoped, tag = 'scratch operand']
  %s0 = inlined_call_operand.vmem [shape: f32[64,16], index: 0, kind: input, shape index: {}]
  %s1 = inlined_call_operand.vmem [shape: f32[8,32], index: 1, kind: input, shape index: {}, may-alias: {1,8}]
  %s2 = inlined_call_operand.vmem [shape: f32[16,32], index: 2, kind: input, shape index: {}]
  %s3 = inlined_call_operand.vmem [shape: f32[32,32], index: 3, kind: input, shape index: {}]
  %s4 = inlined_call_operand.vmem [shape: f32[1,32], index: 4, kind: input, shape index: {}]
  %s5 = inlined_call_operand.vmem [shape: f32[32,128], index: 5, kind: input, shape index: {}]
  %s6 = inlined_call_operand.vmem [shape: f32[1,128], index: 6, kind: input, shape index: {}]
  %s7 = inlined_call_operand.vmem [shape: f32[64,128], index: 7, kind: output, shape index: {0}]
  %s8 = inlined_call_operand.vmem [shape: f32[8,32], index: 8, kind: output, shape index: {1}, may-alias: {1,8}]
  %9 = xla_tuple %s7, %s8
  %s10 = sld [smem:[#allocation0]]
  $region46: #{forward.1} parent=0
    _
  %s12 = ssub.s32 1, %s10
  %s13 = scalar_select 0, %s12, %s10
  // Predicated region
  $region2: #{forward.1} parent=0 // pred_check
    _
  $region3: #{forward.1} parent=0 // pred_check_branch
    %15 = sbr.rel (0) target = $region5
  $region4: #{forward.1} parent=0 // pred_region
    _
  $region5: #{forward.1} parent=0 // pred_fallthru
    _
  // Predicated region
  $region6: #{forward.1} parent=0 // pred_check
    _
  $region7: #{forward.1} parent=0 // pred_check_branch
    %17 = sbr.rel (0) target = $region9
  $region8: #{forward.1} parent=0 // pred_region
    _
  $region9: #{forward.1} parent=0 // pred_fallthru
    _
  // Predicated region
  $region10: #{forward.1} parent=0 // pred_check
    _
  $region11: #{forward.1} parent=0 // pred_check_branch
    %19 = sbr.rel (0) target = $region13
  $region12: #{forward.1} parent=0 // pred_region
    _
  $region13: #{forward.1} parent=0 // pred_fallthru
    _
  // Predicated region
  $region14: #{forward.1} parent=0 // pred_check
    _
  $region15: #{forward.1} parent=0 // pred_check_branch
    %21 = sbr.rel (0) target = $region17
  $region16: #{forward.1} parent=0 // pred_region
    _
  $region17: #{forward.1} parent=0 // pred_fallthru
    _
  // Predicated region
  $region18: #{forward.1} parent=0 // pred_check
    _
  $region19: #{forward.1} parent=0 // pred_check_branch
    %23 = sbr.rel (0) target = $region21
  $region20: #{forward.1} parent=0 // pred_region
    _
  $region21: #{forward.1} parent=0 // pred_fallthru
    _
  // Predicated region
  $region22: #{forward.1} parent=0 // pred_check
    _
  $region23: #{forward.1} parent=0 // pred_check_branch
    %25 = sbr.rel (0) target = $region25
  $region24: #{forward.1} parent=0 // pred_region
    _
  $region25: #{forward.1} parent=0 // pred_fallthru
    _
  // Predicated region
  $region26: #{forward.1} parent=0 // pred_check
    _
  $region27: #{forward.1} parent=0 // pred_check_branch
    %27 = sbr.rel (0) target = $region29
  $region28: #{forward.1} parent=0 // pred_region
    _
  $region29: #{forward.1} parent=0 // pred_fallthru
    _
  %v28 = vld [vmem:[%s0] sm:$0xff]
  %v29 = vld [vmem:[%s0 + $0x8] sm:$0xff]
  %v30 = vld [vmem:[%s0 + $0x10] sm:$0xff]
  %v31 = vld [vmem:[%s0 + $0x18] sm:$0xff]
  %v32 = vld [vmem:[%s0 + $0x20] sm:$0xff]
  %v33 = vld [vmem:[%s0 + $0x28] sm:$0xff]
  %v34 = vld [vmem:[%s0 + $0x30] sm:$0xff]
  %v35 = vld [vmem:[%s0 + $0x38] sm:$0xff]
  %v36 = vld [vmem:[%s2] sm:$0xff]
  %v37 = vld [vmem:[%s2 + $0x8] sm:$0xff]
  %v38 = vld [vmem:[%s4] sm:$0x1]
  %v40 = vperm.slane %v38, 0
  %vm42 = vcmask 130048
  %v44 = vsel %vm42, %v28, 0
  %v47 = vsel %vm42, %v29, 0
  %v50 = vsel %vm42, %v30, 0
  %v53 = vsel %vm42, %v31, 0
  %v56 = vsel %vm42, %v32, 0
  %v59 = vsel %vm42, %v33, 0
  %v62 = vsel %vm42, %v34, 0
  %v65 = vsel %vm42, %v35, 0
  %67 = vmatpush.msra.mxu0 0.0
  %68 = vmatpush.msra.mxu0 0.0
  %69 = vmatpush.msra.mxu0 0.0
  %70 = vmatpush.msra.mxu0 0.0
  %71 = vmatpush.msra.mxu0 0.0
  %72 = vmatpush.msra.mxu0 0.0
  %73 = vmatpush.msra.mxu0 0.0
  %74 = vmatpush.msra.mxu0 0.0
  %75 = vmatpush.msra.mxu0 0.0
  %76 = vmatpush.msra.mxu0 0.0
  %77 = vmatpush.msra.mxu0 0.0
  %78 = vmatpush.msra.mxu0 0.0
  %79 = vmatpush.msra.mxu0 0.0
  %80 = vmatpush.msra.mxu0 0.0
  %81 = vmatpush.msra.mxu0 %v37
  %82 = vmatpush.msra.mxu0 %v36
  %83 = vmatmul.f32.gmra.mxu0 %v44
  %v84 = vpop.f32.mrf.mxu0
  %v85 = vadd.f32 %v40, %v84
  %86 = vmatmul.f32.gmra.mxu0 %v47
  %v87 = vpop.f32.mrf.mxu0
  %v88 = vadd.f32 %v40, %v87
  %89 = vmatmul.f32.gmra.mxu0 %v50
  %v90 = vpop.f32.mrf.mxu0
  %v91 = vadd.f32 %v40, %v90
  %92 = vmatmul.f32.gmra.mxu0 %v53
  %v93 = vpop.f32.mrf.mxu0
  %v94 = vadd.f32 %v40, %v93
  %95 = vmatmul.f32.gmra.mxu0 %v56
  %v96 = vpop.f32.mrf.mxu0
  %v97 = vadd.f32 %v40, %v96
  %98 = vmatmul.f32.gmra.mxu0 %v59
  %v99 = vpop.f32.mrf.mxu0
  %v100 = vadd.f32 %v40, %v99
  %101 = vmatmul.f32.gmra.mxu0 %v62
  %v102 = vpop.f32.mrf.mxu0
  %v103 = vadd.f32 %v40, %v102
  %104 = vmatmul.f32.gmra.mxu0 %v65
  %v105 = vpop.f32.mrf.mxu0
  %v106 = vadd.f32 %v40, %v105
  %107 = vdwg.mxu0
  %v108 = vld [vmem:[%s3] sm:$0xff]
  %v109 = vld [vmem:[%s3 + $0x8] sm:$0xff]
  %v110 = vld [vmem:[%s3 + $0x10] sm:$0xff]
  %v111 = vld [vmem:[%s3 + $0x18] sm:$0xff]
  %v112 = vld [vmem:[%s1] sm:$0xff]
  %vm113 = vcmask 261120
  %v115 = vsel %vm113, %v112, 0
  %117 = vmatpush.msra.mxu0 0.0
  %118 = vmatpush.msra.mxu0 0.0
  %119 = vmatpush.msra.mxu0 0.0
  %120 = vmatpush.msra.mxu0 0.0
  %121 = vmatpush.msra.mxu0 0.0
  %122 = vmatpush.msra.mxu0 0.0
  %123 = vmatpush.msra.mxu0 0.0
  %124 = vmatpush.msra.mxu0 0.0
  %125 = vmatpush.msra.mxu0 0.0
  %126 = vmatpush.msra.mxu0 0.0
  %127 = vmatpush.msra.mxu0 0.0
  %128 = vmatpush.msra.mxu0 0.0
  %129 = vmatpush.msra.mxu0 %v111
  %130 = vmatpush.msra.mxu0 %v110
  %131 = vmatpush.msra.mxu0 %v109
  %132 = vmatpush.msra.mxu0 %v108
  %133 = vmatmul.f32.gmra.mxu0 %v115
  %v134 = vpop.f32.mrf.mxu0
  %v135 = vadd.f32 0.0, %v134
  %136 = vdwg.mxu0
  %v137 = vadd.f32 %v85, %v135
  %v138 = vtanh.pop %v137
  %139 = vst.msk [vmem:[#allocation2] sm:$0xff] %vm113, %v138
  %v141 = vsel %vm113, %v138, 0
  %143 = vmatpush.msra.mxu0 0.0
  %144 = vmatpush.msra.mxu0 0.0
  %145 = vmatpush.msra.mxu0 0.0
  %146 = vmatpush.msra.mxu0 0.0
  %147 = vmatpush.msra.mxu0 0.0
  %148 = vmatpush.msra.mxu0 0.0
  %149 = vmatpush.msra.mxu0 0.0
  %150 = vmatpush.msra.mxu0 0.0
  %151 = vmatpush.msra.mxu0 0.0
  %152 = vmatpush.msra.mxu0 0.0
  %153 = vmatpush.msra.mxu0 0.0
  %154 = vmatpush.msra.mxu0 0.0
  %155 = vmatpush.msra.mxu0 %v111
  %156 = vmatpush.msra.mxu0 %v110
  %157 = vmatpush.msra.mxu0 %v109
  %158 = vmatpush.msra.mxu0 %v108
  %159 = vmatmul.f32.gmra.mxu0 %v141
  %v160 = vpop.f32.mrf.mxu0
  %v161 = vadd.f32 0.0, %v160
  %162 = vdwg.mxu0
  %v163 = vadd.f32 %v88, %v161
  %v164 = vtanh.pop %v163
  %165 = vst.msk [vmem:[#allocation2 + $0x8] sm:$0xff] %vm113, %v164
  %v167 = vsel %vm113, %v164, 0
  %169 = vmatpush.msra.mxu0 0.0
  %170 = vmatpush.msra.mxu0 0.0
  %171 = vmatpush.msra.mxu0 0.0
  %172 = vmatpush.msra.mxu0 0.0
  %173 = vmatpush.msra.mxu0 0.0
  %174 = vmatpush.msra.mxu0 0.0
  %175 = vmatpush.msra.mxu0 0.0
  %176 = vmatpush.msra.mxu0 0.0
  %177 = vmatpush.msra.mxu0 0.0
  %178 = vmatpush.msra.mxu0 0.0
  %179 = vmatpush.msra.mxu0 0.0
  %180 = vmatpush.msra.mxu0 0.0
  %181 = vmatpush.msra.mxu0 %v111
  %182 = vmatpush.msra.mxu0 %v110
  %183 = vmatpush.msra.mxu0 %v109
  %184 = vmatpush.msra.mxu0 %v108
  %185 = vmatmul.f32.gmra.mxu0 %v167
  %v186 = vpop.f32.mrf.mxu0
  %v187 = vadd.f32 0.0, %v186
  %188 = vdwg.mxu0
  %v189 = vadd.f32 %v91, %v187
  %v190 = vtanh.pop %v189
  %191 = vst.msk [vmem:[#allocation2 + $0x10] sm:$0xff] %vm113, %v190
  %v193 = vsel %vm113, %v190, 0
  %195 = vmatpush.msra.mxu0 0.0
  %196 = vmatpush.msra.mxu0 0.0
  %197 = vmatpush.msra.mxu0 0.0
  %198 = vmatpush.msra.mxu0 0.0
  %199 = vmatpush.msra.mxu0 0.0
  %200 = vmatpush.msra.mxu0 0.0
  %201 = vmatpush.msra.mxu0 0.0
  %202 = vmatpush.msra.mxu0 0.0
  %203 = vmatpush.msra.mxu0 0.0
  %204 = vmatpush.msra.mxu0 0.0
  %205 = vmatpush.msra.mxu0 0.0
  %206 = vmatpush.msra.mxu0 0.0
  %207 = vmatpush.msra.mxu0 %v111
  %208 = vmatpush.msra.mxu0 %v110
  %209 = vmatpush.msra.mxu0 %v109
  %210 = vmatpush.msra.mxu0 %v108
  %211 = vmatmul.f32.gmra.mxu0 %v193
  %v212 = vpop.f32.mrf.mxu0
  %v213 = vadd.f32 0.0, %v212
  %214 = vdwg.mxu0
  %v215 = vadd.f32 %v94, %v213
  %v216 = vtanh.pop %v215
  %217 = vst.msk [vmem:[#allocation2 + $0x18] sm:$0xff] %vm113, %v216
  %v219 = vsel %vm113, %v216, 0
  %221 = vmatpush.msra.mxu0 0.0
  %222 = vmatpush.msra.mxu0 0.0
  %223 = vmatpush.msra.mxu0 0.0
  %224 = vmatpush.msra.mxu0 0.0
  %225 = vmatpush.msra.mxu0 0.0
  %226 = vmatpush.msra.mxu0 0.0
  %227 = vmatpush.msra.mxu0 0.0
  %228 = vmatpush.msra.mxu0 0.0
  %229 = vmatpush.msra.mxu0 0.0
  %230 = vmatpush.msra.mxu0 0.0
  %231 = vmatpush.msra.mxu0 0.0
  %232 = vmatpush.msra.mxu0 0.0
  %233 = vmatpush.msra.mxu0 %v111
  %234 = vmatpush.msra.mxu0 %v110
  %235 = vmatpush.msra.mxu0 %v109
  %236 = vmatpush.msra.mxu0 %v108
  %237 = vmatmul.f32.gmra.mxu0 %v219
  %v238 = vpop.f32.mrf.mxu0
  %v239 = vadd.f32 0.0, %v238
  %240 = vdwg.mxu0
  %v241 = vadd.f32 %v97, %v239
  %v242 = vtanh.pop %v241
  %243 = vst.msk [vmem:[#allocation2 + $0x20] sm:$0xff] %vm113, %v242
  %v245 = vsel %vm113, %v242, 0
  %247 = vmatpush.msra.mxu0 0.0
  %248 = vmatpush.msra.mxu0 0.0
  %249 = vmatpush.msra.mxu0 0.0
  %250 = vmatpush.msra.mxu0 0.0
  %251 = vmatpush.msra.mxu0 0.0
  %252 = vmatpush.msra.mxu0 0.0
  %253 = vmatpush.msra.mxu0 0.0
  %254 = vmatpush.msra.mxu0 0.0
  %255 = vmatpush.msra.mxu0 0.0
  %256 = vmatpush.msra.mxu0 0.0
  %257 = vmatpush.msra.mxu0 0.0
  %258 = vmatpush.msra.mxu0 0.0
  %259 = vmatpush.msra.mxu0 %v111
  %260 = vmatpush.msra.mxu0 %v110
  %261 = vmatpush.msra.mxu0 %v109
  %262 = vmatpush.msra.mxu0 %v108
  %263 = vmatmul.f32.gmra.mxu0 %v245
  %v264 = vpop.f32.mrf.mxu0
  %v265 = vadd.f32 0.0, %v264
  %266 = vdwg.mxu0
  %v267 = vadd.f32 %v100, %v265
  %v268 = vtanh.pop %v267
  %269 = vst.msk [vmem:[#allocation2 + $0x28] sm:$0xff] %vm113, %v268
  %v271 = vsel %vm113, %v268, 0
  %273 = vmatpush.msra.mxu0 0.0
  %274 = vmatpush.msra.mxu0 0.0
  %275 = vmatpush.msra.mxu0 0.0
  %276 = vmatpush.msra.mxu0 0.0
  %277 = vmatpush.msra.mxu0 0.0
  %278 = vmatpush.msra.mxu0 0.0
  %279 = vmatpush.msra.mxu0 0.0
  %280 = vmatpush.msra.mxu0 0.0
  %281 = vmatpush.msra.mxu0 0.0
  %282 = vmatpush.msra.mxu0 0.0
  %283 = vmatpush.msra.mxu0 0.0
  %284 = vmatpush.msra.mxu0 0.0
  %285 = vmatpush.msra.mxu0 %v111
  %286 = vmatpush.msra.mxu0 %v110
  %287 = vmatpush.msra.mxu0 %v109
  %288 = vmatpush.msra.mxu0 %v108
  %289 = vmatmul.f32.gmra.mxu0 %v271
  %v290 = vpop.f32.mrf.mxu0
  %v291 = vadd.f32 0.0, %v290
  %292 = vdwg.mxu0
  %v293 = vadd.f32 %v103, %v291
  %v294 = vtanh.pop %v293
  %295 = vst.msk [vmem:[#allocation2 + $0x30] sm:$0xff] %vm113, %v294
  %v297 = vsel %vm113, %v294, 0
  %299 = vmatpush.msra.mxu0 0.0
  %300 = vmatpush.msra.mxu0 0.0
  %301 = vmatpush.msra.mxu0 0.0
  %302 = vmatpush.msra.mxu0 0.0
  %303 = vmatpush.msra.mxu0 0.0
  %304 = vmatpush.msra.mxu0 0.0
  %305 = vmatpush.msra.mxu0 0.0
  %306 = vmatpush.msra.mxu0 0.0
  %307 = vmatpush.msra.mxu0 0.0
  %308 = vmatpush.msra.mxu0 0.0
  %309 = vmatpush.msra.mxu0 0.0
  %310 = vmatpush.msra.mxu0 0.0
  %311 = vmatpush.msra.mxu0 %v111
  %312 = vmatpush.msra.mxu0 %v110
  %313 = vmatpush.msra.mxu0 %v109
  %314 = vmatpush.msra.mxu0 %v108
  %315 = vmatmul.f32.gmra.mxu0 %v297
  %v316 = vpop.f32.mrf.mxu0
  %v317 = vadd.f32 0.0, %v316
  %318 = vdwg.mxu0
  %v319 = vadd.f32 %v106, %v317
  %v320 = vtanh.pop %v319
  %321 = vst.msk [vmem:[#allocation2 + $0x38] sm:$0xff] %vm113, %v320
  %v322 = vld [vmem:[#allocation2] sm:$0xff]
  %v323 = vld [vmem:[#allocation2 + $0x8] sm:$0xff]
  %v324 = vld [vmem:[#allocation2 + $0x10] sm:$0xff]
  %v325 = vld [vmem:[#allocation2 + $0x18] sm:$0xff]
  %v326 = vld [vmem:[#allocation2 + $0x20] sm:$0xff]
  %v327 = vld [vmem:[#allocation2 + $0x28] sm:$0xff]
  %v328 = vld [vmem:[#allocation2 + $0x30] sm:$0xff]
  %v329 = vld [vmem:[#allocation2 + $0x38] sm:$0xff]
  %v330 = vld [vmem:[%s5] sm:$0xff]
  %v331 = vld [vmem:[%s5 + $0x8] sm:$0xff]
  %v332 = vld [vmem:[%s5 + $0x10] sm:$0xff]
  %v333 = vld [vmem:[%s5 + $0x18] sm:$0xff]
  %v334 = vld [vmem:[%s6] sm:$0x1]
  %v336 = vperm.slane %v334, 0
  %v339 = vsel %vm113, %v322, 0
  %v342 = vsel %vm113, %v323, 0
  %v345 = vsel %vm113, %v324, 0
  %v348 = vsel %vm113, %v325, 0
  %v351 = vsel %vm113, %v326, 0
  %v354 = vsel %vm113, %v327, 0
  %v357 = vsel %vm113, %v328, 0
  %v360 = vsel %vm113, %v329, 0
  %362 = vmatpush.msra.mxu0 0.0
  %363 = vmatpush.msra.mxu0 0.0
  %364 = vmatpush.msra.mxu0 0.0
  %365 = vmatpush.msra.mxu0 0.0
  %366 = vmatpush.msra.mxu0 0.0
  %367 = vmatpush.msra.mxu0 0.0
  %368 = vmatpush.msra.mxu0 0.0
  %369 = vmatpush.msra.mxu0 0.0
  %370 = vmatpush.msra.mxu0 0.0
  %371 = vmatpush.msra.mxu0 0.0
  %372 = vmatpush.msra.mxu0 0.0
  %373 = vmatpush.msra.mxu0 0.0
  %374 = vmatpush.msra.mxu0 %v333
  %375 = vmatpush.msra.mxu0 %v332
  %376 = vmatpush.msra.mxu0 %v331
  %377 = vmatpush.msra.mxu0 %v330
  %378 = vmatmul.f32.gmra.mxu0 %v339
  %v379 = vpop.f32.mrf.mxu0
  %v380 = vadd.f32 %v336, %v379
  %381 = vmatmul.f32.gmra.mxu0 %v342
  %v382 = vpop.f32.mrf.mxu0
  %v383 = vadd.f32 %v336, %v382
  %384 = vmatmul.f32.gmra.mxu0 %v345
  %v385 = vpop.f32.mrf.mxu0
  %v386 = vadd.f32 %v336, %v385
  %387 = vmatmul.f32.gmra.mxu0 %v348
  %v388 = vpop.f32.mrf.mxu0
  %v389 = vadd.f32 %v336, %v388
  %390 = vmatmul.f32.gmra.mxu0 %v351
  %v391 = vpop.f32.mrf.mxu0
  %v392 = vadd.f32 %v336, %v391
  %393 = vmatmul.f32.gmra.mxu0 %v354
  %v394 = vpop.f32.mrf.mxu0
  %v395 = vadd.f32 %v336, %v394
  %396 = vmatmul.f32.gmra.mxu0 %v357
  %v397 = vpop.f32.mrf.mxu0
  %v398 = vadd.f32 %v336, %v397
  %399 = vmatmul.f32.gmra.mxu0 %v360
  %v400 = vpop.f32.mrf.mxu0
  %v401 = vadd.f32 %v336, %v400
  %402 = vdwg.mxu0
  %403 = vst [vmem:[%s7] sm:$0xff] %v380
  %404 = vst [vmem:[%s7 + $0x8] sm:$0xff] %v383
  %405 = vst [vmem:[%s7 + $0x10] sm:$0xff] %v386
  %406 = vst [vmem:[%s7 + $0x18] sm:$0xff] %v389
  %407 = vst [vmem:[%s7 + $0x20] sm:$0xff] %v392
  %408 = vst [vmem:[%s7 + $0x28] sm:$0xff] %v395
  %409 = vst [vmem:[%s7 + $0x30] sm:$0xff] %v398
  %410 = vst [vmem:[%s7 + $0x38] sm:$0xff] %v401
  %411 = vst.msk [vmem:[%s8] sm:$0xff] %vm113, %v320
  // Predicated region
  $region30: #{forward.1} parent=0 // pred_check
    _
  $region31: #{forward.1} parent=0 // pred_check_branch
    %413 = sbr.rel (0) target = $region33
  $region32: #{forward.1} parent=0 // pred_region
    _
  $region33: #{forward.1} parent=0 // pred_fallthru
    _
  // Predicated region
  $region34: #{forward.1} parent=0 // pred_check
    _
  $region35: #{forward.1} parent=0 // pred_check_branch
    %415 = sbr.rel (0) target = $region37
  $region36: #{forward.1} parent=0 // pred_region
    _
  $region37: #{forward.1} parent=0 // pred_fallthru
    _
  // Predicated region
  $region38: #{forward.1} parent=0 // pred_check
    _
  $region39: #{forward.1} parent=0 // pred_check_branch
    %417 = sbr.rel (0) target = $region41
  $region40: #{forward.1} parent=0 // pred_region
    _
  $region41: #{forward.1} parent=0 // pred_fallthru
    _
  // Predicated region
  $region42: #{forward.1} parent=0 // pred_check
    _
  $region43: #{forward.1} parent=0 // pred_check_branch
    %419 = sbr.rel (0) target = $region45
  $region44: #{forward.1} parent=0 // pred_region
    _
  $region45: #{forward.1} parent=0 // pred_fallthru
    _

</llo_original>
